<compile_context>
chip_gen: v5e
topology: v5e:2x2
jax: 0.10.0
libtpu: 0.0.40
codegen_flags: <defaults>
</compile_context>

<pallas_src>
import math

import jax
import jax.numpy as jnp
from jax.experimental import pallas as pl
from jax.experimental.pallas import tpu as pltpu


def _pos_enc_kernel(x_ref, pe_ref, o_ref):
    # x_ref: (S_blk, B, D), pe_ref: (S_blk, 1, D) -> broadcast-add over batch
    # (sublane axis); pure VPU work, fully hidden under the HBM DMA pipeline.
    o_ref[...] = (x_ref[...] + pe_ref[...]).astype(o_ref.dtype)


def make_positional_encoding_table(d_model, max_len=1000):
    """Builds the (max_len, 1, d_model) sin/cos buffer exactly like PyTorch's `pe`."""
    position = jnp.arange(max_len, dtype=jnp.float32)[:, None]           # (max_len, 1)
    div_term = jnp.exp(
        jnp.arange(0, d_model, 2, dtype=jnp.float32)
        * (-math.log(10000.0) / d_model))                                # (d_model//2,)
    pe = jnp.zeros((max_len, d_model), jnp.float32)
    pe = pe.at[:, 0::2].set(jnp.sin(position * div_term))
    pe = pe.at[:, 1::2].set(jnp.cos(position * div_term))
    return pe[:, None, :]                                                # (max_len, 1, d_model)


def positional_encoding_forward(x, pe_table, *, vmem_budget_bytes=16 * 1024 * 1024):
    """x: (S, B, D); pe_table: (max_len, 1, D). Returns x + pe[:S] broadcast over B."""
    S, B, D = x.shape
    max_len = pe_table.shape[0]
    assert S <= max_len, "sequence length exceeds positional-encoding max_len"

    # VMEM-budget-aware sequence block: per row we hold (double-buffered)
    # an x tile, an out tile and one pe row.
    x_bytes = jnp.dtype(x.dtype).itemsize
    pe_bytes = jnp.dtype(pe_table.dtype).itemsize
    per_row = 2 * (2 * B * D * x_bytes) + 2 * (D * pe_bytes)
    seq_block = int(max(1, min(S, vmem_budget_bytes // per_row)))
    n_blk = pl.cdiv(S, seq_block)
    s_pad = n_blk * seq_block

    if s_pad == S:
        # Common case: no copies at all. Only the first S rows of pe are read.
        x_in, pe_in = x, pe_table
    else:
        # Rare fallback (huge S not a multiple of the block): pad for safety.
        pad = s_pad - S
        x_in = jnp.pad(x, ((0, pad), (0, 0), (0, 0)))
        pe_in = jnp.pad(pe_table[:S], ((0, pad), (0, 0), (0, 0)))

    out = pl.pallas_call(
        _pos_enc_kernel,
        out_shape=jax.ShapeDtypeStruct((s_pad, B, D), x.dtype),
        grid_spec=pltpu.PrefetchScalarGridSpec(
            num_scalar_prefetch=0,
            grid=(n_blk,),
            in_specs=[
                pl.BlockSpec((seq_block, B, D), lambda i: (i, 0, 0)),
                pl.BlockSpec((seq_block, 1, D), lambda i: (i, 0, 0)),
            ],
            out_specs=pl.BlockSpec((seq_block, B, D), lambda i: (i, 0, 0)),
        ),
        compiler_params=pltpu.CompilerParams(
            dimension_semantics=("parallel",),
        ),
    )(x_in, pe_in)

    return out if s_pad == S else out[:S]


if __name__ == "__main__":
    # Small deterministic example: seq=8, batch=2, d_model=32, max_len=1000.
    S, B, D = 8, 2, 32
    MAX_LEN = 1000

    key = jax.random.PRNGKey(0)
    x = jax.random.normal(key, (S, B, D), jnp.float32)
    pe_table = make_positional_encoding_table(D, MAX_LEN)

    fwd = jax.jit(positional_encoding_forward)
    out = fwd(x, pe_table)
    jax.block_until_ready(out)

    assert out.shape == (S, B, D), out.shape

    # Pure-JAX reference: x + pe[:S] broadcast over batch (matches PyTorch forward).
    ref = x + pe_table[:S]
    max_err = float(jnp.max(jnp.abs(out - ref)))
    assert jnp.allclose(out, ref, atol=1e-6, rtol=1e-6), max_err

    print("KERNEL_OK")
</pallas_src>

<mosaic_0001>
module attributes {stable_mosaic.version = 11 : i64} {
  func.func @_pos_enc_kernel(%arg0: i32, %arg1: memref<8x2x32xf32, #tpu.memory_space<vmem>>, %arg2: memref<8x1x32xf32, #tpu.memory_space<vmem>>, %arg3: memref<8x2x32xf32, #tpu.memory_space<vmem>>) attributes {dimension_semantics = [#tpu.dimension_semantics<parallel>], iteration_bounds = array<i64: 1>, scalar_prefetch = 0 : i64, scratch_operands = 0 : i64, tpu.core_type = #tpu.core_type<tc>, window_params = [{transform_indices = @transform_0, window_bounds = array<i64: 8, 2, 32>}, {transform_indices = @transform_1, window_bounds = array<i64: 8, 1, 32>}, {transform_indices = @transform_2, window_bounds = array<i64: 8, 2, 32>}]} {
    %c0 = arith.constant 0 : index
    %c0_0 = arith.constant 0 : index
    %c0_1 = arith.constant 0 : index
    %0 = vector.load %arg1[%c0, %c0_0, %c0_1] : memref<8x2x32xf32, #tpu.memory_space<vmem>>, vector<8x2x32xf32>
    %c0_2 = arith.constant 0 : index
    %c0_3 = arith.constant 0 : index
    %c0_4 = arith.constant 0 : index
    %1 = vector.load %arg2[%c0_2, %c0_3, %c0_4] : memref<8x1x32xf32, #tpu.memory_space<vmem>>, vector<8x1x32xf32>
    %2 = vector.broadcast %1 : vector<8x1x32xf32> to vector<8x2x32xf32>
    %3 = arith.addf %0, %2 : vector<8x2x32xf32>
    %c0_5 = arith.constant 0 : index
    %c0_6 = arith.constant 0 : index
    %c0_7 = arith.constant 0 : index
    %4 = vector.load %arg3[%c0_5, %c0_6, %c0_7] : memref<8x2x32xf32, #tpu.memory_space<vmem>>, vector<8x2x32xf32>
    tpu.vector_store %arg3[%c0_5, %c0_6, %c0_7], %3 {strides = array<i32>} : memref<8x2x32xf32, #tpu.memory_space<vmem>>, vector<8x2x32xf32>,
    return
  }
  func.func @transform_0(%arg0: i32) -> (i32, i32, i32) {
    %c0_i32 = arith.constant 0 : i32
    %c0_i32_0 = arith.constant 0 : i32
    %c0_i32_1 = arith.constant 0 : i32
    return %arg0, %c0_i32, %c0_i32_0 : i32, i32, i32
  }
  func.func @transform_1(%arg0: i32) -> (i32, i32, i32) {
    %c0_i32 = arith.constant 0 : i32
    %c0_i32_0 = arith.constant 0 : i32
    %c0_i32_1 = arith.constant 0 : i32
    return %arg0, %c0_i32, %c0_i32_0 : i32, i32, i32
  }
  func.func @transform_2(%arg0: i32) -> (i32, i32, i32) {
    %c0_i32 = arith.constant 0 : i32
    %c0_i32_0 = arith.constant 0 : i32
    %c0_i32_1 = arith.constant 0 : i32
    return %arg0, %c0_i32, %c0_i32_0 : i32, i32, i32
  }
}

</mosaic_0001>

<llo_original>
// kernel: positional_encoding_forward.1
$region0: #{positional_encoding_forward.1}
  #allocation0 [shape = 'u32[]', space=smem, size = 0x4, offset = 0x4, fixed_abs, tag = 'smem constant byte address 0x4 - core index']
  #allocation1 [shape = 'u32[72,128]{1,0:T(1,128)}', space=vmem, size = 0x9000, scoped, tag = 'internal scratch']
  %s0 = inlined_call_operand.vmem [shape: f32[8,2,32], index: 0, kind: input, shape index: {}]
  %s1 = inlined_call_operand.vmem [shape: f32[1000,1,32], index: 1, kind: input, shape index: {}]
  %s2 = inlined_call_operand.hbm [shape: f32[8,2,32], index: 2, kind: output, shape index: {}]
  %s3 = sld [smem:[#allocation0]]
  $region18: #{positional_encoding_forward.1} parent=0
    _
  %s5 = ssub.s32 1, %s3
  %s6 = scalar_select 0, %s5, %s3
  $region1: #{positional_encoding_forward.1} parent=0
    #allocation2 [shape = 'u8[8192]{0}', space=vmem, size = 0x2000, scoped, tag = 'output window, operand 0, single buffered']
    #allocation3 [shape = 's32[1]{0}', space=sflag, size = 0x4, scoped, tag = 'scoped memory for positional_encoding_forward.1']
    %7 = vsyncpa [#allocation3], 0
    // Predicated region
    $region2: #{positional_encoding_forward.1} parent=1 // pred_check
      _
    $region3: #{positional_encoding_forward.1} parent=1 // pred_check_branch
      %9 = sbr.rel (0) target = $region5
    $region4: #{positional_encoding_forward.1} parent=1 // pred_region
      _
    $region5: #{positional_encoding_forward.1} parent=1 // pred_fallthru
      _
    // Predicated region
    $region6: #{positional_encoding_forward.1} parent=1 // pred_check
      _
    $region7: #{positional_encoding_forward.1} parent=1 // pred_check_branch
      %11 = sbr.rel (0) target = $region9
    $region8: #{positional_encoding_forward.1} parent=1 // pred_region
      _
    $region9: #{positional_encoding_forward.1} parent=1 // pred_fallthru
      _
    %v12 = vld [vmem:[%s0] sm:$0x3]
    %v13 = vld [vmem:[%s0 + $0x2] sm:$0x3]
    %v14 = vld [vmem:[%s0 + $0x4] sm:$0x3]
    %v15 = vld [vmem:[%s0 + $0x6] sm:$0x3]
    %v16 = vld [vmem:[%s0 + $0x8] sm:$0x3]
    %v17 = vld [vmem:[%s0 + $0xa] sm:$0x3]
    %v18 = vld [vmem:[%s0 + $0xc] sm:$0x3]
    %v19 = vld [vmem:[%s0 + $0xe] sm:$0x3]
    %v20 = vld [vmem:[%s1] sm:$0x1]
    %v21 = vld [vmem:[%s1 + $0x1] sm:$0x1]
    %v22 = vld [vmem:[%s1 + $0x2] sm:$0x1]
    %v23 = vld [vmem:[%s1 + $0x3] sm:$0x1]
    %v24 = vld [vmem:[%s1 + $0x4] sm:$0x1]
    %v25 = vld [vmem:[%s1 + $0x5] sm:$0x1]
    %v26 = vld [vmem:[%s1 + $0x6] sm:$0x1]
    %v27 = vld [vmem:[%s1 + $0x7] sm:$0x1]
    %v36 = vperm.slane %v20, 0
    %v37 = vperm.slane %v21, 0
    %v38 = vperm.slane %v22, 0
    %v39 = vperm.slane %v23, 0
    %v40 = vperm.slane %v24, 0
    %v41 = vperm.slane %v25, 0
    %v42 = vperm.slane %v26, 0
    %v43 = vperm.slane %v27, 0
    %v52 = vadd.f32 %v12, %v36
    %v53 = vadd.f32 %v13, %v37
    %v54 = vadd.f32 %v14, %v38
    %v55 = vadd.f32 %v15, %v39
    %v56 = vadd.f32 %v16, %v40
    %v57 = vadd.f32 %v17, %v41
    %v58 = vadd.f32 %v18, %v42
    %v59 = vadd.f32 %v19, %v43
    %vm60 = vcmask 254976
    %61 = vst.msk [vmem:[#allocation2] sm:$0x3] %vm60, %v52
    %62 = vst.msk [vmem:[#allocation2 + $0x2] sm:$0x3] %vm60, %v53
    %63 = vst.msk [vmem:[#allocation2 + $0x4] sm:$0x3] %vm60, %v54
    %64 = vst.msk [vmem:[#allocation2 + $0x6] sm:$0x3] %vm60, %v55
    %65 = vst.msk [vmem:[#allocation2 + $0x8] sm:$0x3] %vm60, %v56
    %66 = vst.msk [vmem:[#allocation2 + $0xa] sm:$0x3] %vm60, %v57
    %67 = vst.msk [vmem:[#allocation2 + $0xc] sm:$0x3] %vm60, %v58
    %68 = vst.msk [vmem:[#allocation2 + $0xe] sm:$0x3] %vm60, %v59
    // Predicated region
    $region10: #{positional_encoding_forward.1} parent=1 // pred_check
      _
    $region11: #{positional_encoding_forward.1} parent=1 // pred_check_branch
      %70 = sbr.rel (0) target = $region13
    $region12: #{positional_encoding_forward.1} parent=1 // pred_region
      %72 = vsyncadd [#allocation3], 0
      %s73 = sshll.u32 [#allocation2], 4
      %s74 = int_to_ptr.vmem [resolvable:$true] %s73
      %s75 = sshll.u32 %s2, 4
      %s76 = int_to_ptr.hbm [resolvable:$true] %s75
      %81 = dma.vmem_to_hbm [thread:$0]  %s74, 256, %s76, [#allocation3], 32, 32, 2
    $region13: #{positional_encoding_forward.1} parent=1 // pred_fallthru
      _
    // Predicated region
    $region14: #{positional_encoding_forward.1} parent=1 // pred_check
      _
    $region15: #{positional_encoding_forward.1} parent=1 // pred_check_branch
      %83 = sbr.rel (0) target = $region17
    $region16: #{positional_encoding_forward.1} parent=1 // pred_region
      %85 = dma.done [#allocation3], 256
    $region17: #{positional_encoding_forward.1} parent=1 // pred_fallthru
      _
    %86 = vsyncpa [#allocation3], 1

</llo_original>
